<compile_context>
chip_gen: v7x
topology: tpu7x:2x2x1
jax: 0.10.0
libtpu: 0.0.40
codegen_flags: <defaults>
</compile_context>

<pallas_src>
import functools
import math

import jax
import jax.numpy as jnp
from jax.experimental import pallas as pl
from jax.experimental.pallas import tpu as pltpu


def _round_up(x, m):
    return ((x + m - 1) // m) * m


def _conv_folded_kernel(x_ref, w_ref, b_ref, o_ref, rhs_ref, *,
                        KH, KW, Wp, TWp, Cp, activation):
    """Small-channel path: one grid step = one (image, output-row-tile).

    x_ref  : (1, 1, Cp, LB)        flattened (rows-with-halo * Wp) input block
    w_ref  : (OCp, KH*KW*Cp)       scale-folded weight, taps folded into K
    b_ref  : (OCp, 1)              bias (lr_mul and activation gain folded)
    o_ref  : (1, 1, OCp, TWp)      output block, compute dtype; TWp = TH*Wp
    rhs_ref: (KH*KW*Cp, TWp)       VMEM scratch: stacked shifted slabs
    """
    # Stack the KH*KW statically shifted windows into the contraction axis.
    for kh in range(KH):
        for kw in range(KW):
            r = kh * KW + kw
            shift = kh * Wp + kw
            rhs_ref[r * Cp:(r + 1) * Cp, :] = x_ref[0, 0, :, shift:shift + TWp]
    # One MXU matmul with K = KH*KW*Cp instead of KH*KW tiny-K matmuls.
    out = jnp.dot(w_ref[...], rhs_ref[...], preferred_element_type=jnp.float32)
    out = out + b_ref[...]
    if activation:  # sqrt(2) gain already folded into weight/bias
        out = jnp.where(out >= 0.0, out, 0.2 * out)
    o_ref[0, 0] = out.astype(o_ref.dtype)


def _conv_taps_kernel(x_ref, w_ref, b_ref, o_ref, *,
                      KH, KW, Wp, TWp, OCp, activation):
    """Large-channel path: KH*KW accumulated (OCp,Cp)@(Cp,TWp) MXU matmuls.

    x_ref : (1, 1, Cp, LB)     w_ref : (KH*KW, OCp, Cp)
    b_ref : (OCp, 1)           o_ref : (1, 1, OCp, TWp)
    """
    acc = jnp.zeros((OCp, TWp), jnp.float32)
    for kh in range(KH):
        for kw in range(KW):
            r = kh * KW + kw
            shift = kh * Wp + kw
            acc = acc + jnp.dot(w_ref[r], x_ref[0, 0, :, shift:shift + TWp],
                                preferred_element_type=jnp.float32)
    out = acc + b_ref[...]
    if activation:
        out = jnp.where(out >= 0.0, out, 0.2 * out)
    o_ref[0, 0] = out.astype(o_ref.dtype)


def equal_conv2d(x, weight, bias, *, stride=1, padding=0, lr_mul=1.0,
                 activation=False, compute_dtype=jnp.bfloat16,
                 fold_taps=None, tile_rows=None):
    """EqualConv2d forward (F.conv2d path). x: NCHW, weight: (OC, C, KH, KW).

    Returns NCHW output in `compute_dtype`.
    """
    N, C, H, W = x.shape
    OC, _, KH, KW = weight.shape
    scale = 1.0 / math.sqrt(C * KH * KW) * lr_mul
    act_gain = math.sqrt(2.0) if activation else 1.0  # folded into weight/bias

    Hp, Wp = H + 2 * padding, W + 2 * padding
    OH1, OW1 = Hp - KH + 1, Wp - KW + 1  # stride-1 "full" output grid
    assert OH1 >= 1 and OW1 >= 1, "kernel larger than padded input"

    sub = 16 if jnp.dtype(compute_dtype) == jnp.dtype(jnp.bfloat16) else 8
    Cp = _round_up(C, sub)
    OCp = _round_up(OC, sub)
    Kc = KH * KW * Cp
    if fold_taps is None:
        fold_taps = Kc <= 512        # small-channel layers: fold taps into K
    bytes_in = jnp.dtype(compute_dtype).itemsize
    bytes_out = bytes_in             # output stored in compute dtype

    # --- generation-aware VMEM budget ---
    try:
        vmem_cap = int(getattr(pltpu.get_tpu_info(), "vmem_capacity_bytes",
                               64 * 1024 * 1024))
    except Exception:
        vmem_cap = 64 * 1024 * 1024
    budget = int(vmem_cap * 0.45)

    def live_bytes(th):
        twp = th * Wp
        lb = (th + KH) * Wp
        b = 2 * Cp * lb * bytes_in                 # input block (double-buffered)
        b += 2 * OCp * twp * bytes_out             # output block (double-buffered)
        b += 2 * Kc * OCp * bytes_in               # weight block (2 pipeline bufs)
        b += OCp * twp * 4                         # f32 accumulator / mm result
        b += (Kc if fold_taps else Cp) * twp * bytes_in  # stacked RHS / live slab
        return b

    if tile_rows is not None:
        TH = max(1, min(int(tile_rows), OH1))
    else:
        TH = OH1
        while TH > 1 and live_bytes(TH) > budget:
            TH = (TH + 1) // 2
        # v7x has 2 TensorCores: make sure the (N, NT) grid has >= 2 steps.
        if N * pl.cdiv(OH1, TH) < 2 and OH1 >= 2:
            TH = (OH1 + 1) // 2
    NT = pl.cdiv(OH1, TH)
    Hblk = TH + KH                   # rows per block: TH + (KH-1) halo + 1 spare
    TWp = TH * Wp
    LB = Hblk * Wp                   # flattened block length (full-dim block, no
                                     # 128-alignment needed)

    # ---- layout prep: one pad; NT==1 then needs only a reshape ----
    Hneed = NT * TH + KH
    xp = jnp.pad(x, ((0, 0), (0, Cp - C),
                     (padding, padding + (Hneed - Hp)),
                     (padding, padding))).astype(compute_dtype)  # (N,Cp,Hneed,Wp)
    if NT == 1:
        xb = xp.reshape(N, 1, Cp, LB)
    else:
        # TODO(synk): replace with in-kernel manual-DMA halo windows.
        xb = jnp.stack([xp[:, :, t * TH:t * TH + Hblk, :] for t in range(NT)],
                       axis=1).reshape(N, NT, Cp, LB)

    w_scaled = weight * (scale * act_gain)
    if fold_taps:
        w_p = jnp.transpose(w_scaled, (0, 2, 3, 1))              # (OC,KH,KW,C)
        w_p = jnp.pad(w_p, ((0, OCp - OC), (0, 0), (0, 0), (0, Cp - C)))
        w_p = w_p.reshape(OCp, Kc).astype(compute_dtype)
        w_spec = pl.BlockSpec((OCp, Kc), lambda n, t: (0, 0))
        scratch = [pltpu.VMEM((Kc, TWp), compute_dtype)]
        kernel = functools.partial(_conv_folded_kernel, KH=KH, KW=KW, Wp=Wp,
                                   TWp=TWp, Cp=Cp, activation=activation)
    else:
        w_p = jnp.transpose(w_scaled, (2, 3, 0, 1)).reshape(KH * KW, OC, C)
        w_p = jnp.pad(w_p, ((0, 0), (0, OCp - OC),
                            (0, Cp - C))).astype(compute_dtype)
        w_spec = pl.BlockSpec((KH * KW, OCp, Cp), lambda n, t: (0, 0, 0))
        scratch = []
        kernel = functools.partial(_conv_taps_kernel, KH=KH, KW=KW, Wp=Wp,
                                   TWp=TWp, OCp=OCp, activation=activation)

    b_eff = (bias * lr_mul) if bias is not None else jnp.zeros((OC,), jnp.float32)
    b_p = jnp.pad(b_eff.astype(jnp.float32) * act_gain,
                  (0, OCp - OC)).reshape(OCp, 1)

    flops = 2 * N * NT * OCp * Kc * TWp
    bytes_accessed = (xb.size * bytes_in + w_p.size * bytes_in + b_p.size * 4
                      + N * NT * OCp * TWp * bytes_out)
    vmem_limit = int(min(vmem_cap,
                         max(32 * 1024 * 1024, live_bytes(TH) + 4 * 1024 * 1024)))

    out_p = pl.pallas_call(
        kernel,
        out_shape=jax.ShapeDtypeStruct((N, NT, OCp, TWp), compute_dtype),
        grid_spec=pltpu.PrefetchScalarGridSpec(
            num_scalar_prefetch=0,
            grid=(N, NT),
            in_specs=[
                pl.BlockSpec((1, 1, Cp, LB), lambda n, t: (n, t, 0, 0)),
                w_spec,
                pl.BlockSpec((OCp, 1), lambda n, t: (0, 0)),
            ],
            out_specs=pl.BlockSpec((1, 1, OCp, TWp), lambda n, t: (n, t, 0, 0)),
            scratch_shapes=scratch,
        ),
        compiler_params=pltpu.CompilerParams(
            dimension_semantics=("parallel", "parallel"),
            vmem_limit_bytes=vmem_limit),
        cost_estimate=pl.CostEstimate(flops=flops, transcendentals=0,
                                      bytes_accessed=bytes_accessed),
    )(xb, w_p, b_p)

    # Back to NCHW.  The transpose is a no-op when NT == 1 (the common case).
    out = out_p.reshape(N, NT, OCp, TH, Wp)
    out = jnp.transpose(out, (0, 2, 1, 3, 4)).reshape(N, OCp, NT * TH, Wp)
    out = out[:, :OC, :OH1, :OW1]
    if stride > 1:
        out = out[:, :, ::stride, ::stride]
    return out


if __name__ == "__main__":
    key = jax.random.PRNGKey(0)
    kw_key, kx_key = jax.random.split(key)

    # EqualConv2d(in_channel=4, out_channel=8, kernel_size=3, padding=1)
    N, C, H, W = 2, 4, 16, 16
    OC, K = 8, 3
    lr_mul = 1.0
    bias_init = 0.0

    weight = jax.random.normal(kw_key, (OC, C, K, K), jnp.float32) / lr_mul
    bias = jnp.full((OC,), bias_init, jnp.float32)
    x = jax.random.normal(kx_key, (N, C, H, W), jnp.float32)

    scale = 1.0 / math.sqrt(C * K * K) * lr_mul

    def reference(stride, padding, activation):
        ref = jax.lax.conv_general_dilated(
            x, weight * scale, window_strides=(stride, stride),
            padding=[(padding, padding), (padding, padding)],
            dimension_numbers=("NCHW", "OIHW", "NCHW"),
            precision=jax.lax.Precision.HIGHEST)
        ref = ref + (bias * lr_mul)[None, :, None, None]
        if activation:
            ref = jnp.where(ref >= 0, ref, 0.2 * ref) * math.sqrt(2.0)
        return ref

    cases = [
        # (stride, padding, activation, compute_dtype, fold_taps, tile_rows, tol)
        (1, 1, False, jnp.float32, None, None, 2e-3),   # folded-taps, NT=1
        (1, 1, True,  jnp.float32, None, None, 2e-3),   # + ScaledLeakyReLU
        (2, 1, False, jnp.float32, None, None, 2e-3),   # stride-2
        (1, 1, True,  jnp.bfloat16, None, None, 1e-1),  # bf16 MXU + bf16 output
        (1, 1, False, jnp.float32, False, 4, 2e-3),     # per-tap path, NT>1
    ]
    for stride, padding, activation, cdt, fold, trows, tol in cases:
        out = equal_conv2d(x, weight, bias, stride=stride, padding=padding,
                           lr_mul=lr_mul, activation=activation,
                           compute_dtype=cdt, fold_taps=fold, tile_rows=trows)
        out = jax.block_until_ready(out)
        ref = reference(stride, padding, activation)
        out_f32 = out.astype(jnp.float32)
        assert out.shape == ref.shape, (out.shape, ref.shape)
        max_err = float(jnp.max(jnp.abs(out_f32 - ref)))
        assert jnp.allclose(out_f32, ref, atol=tol, rtol=tol), (
            stride, padding, activation, str(cdt), fold, trows, max_err)

    print("KERNEL_OK")
</pallas_src>

<mosaic_0001>
module attributes {stable_mosaic.version = 11 : i64} {
  func.func @_conv_folded_kernel(%arg0: i32, %arg1: i32, %arg2: memref<1x1x8x342xf32, #tpu.memory_space<vmem>>, %arg3: memref<8x72xf32, #tpu.memory_space<vmem>>, %arg4: memref<8x1xf32, #tpu.memory_space<vmem>>, %arg5: memref<1x1x8x288xf32, #tpu.memory_space<vmem>>, %arg6: memref<72x288xf32, #tpu.memory_space<vmem>>) attributes {dimension_semantics = [#tpu.dimension_semantics<parallel>, #tpu.dimension_semantics<parallel>], iteration_bounds = array<i64: 2, 1>, scalar_prefetch = 0 : i64, scratch_operands = 1 : i64, tpu.core_type = #tpu.core_type<tc>, window_params = [{transform_indices = @transform_0, window_bounds = array<i64: 1, 1, 8, 342>}, {pipeline_mode = #tpu.pipeline_mode<synchronous>, transform_indices = @transform_1, window_bounds = array<i64: 8, 72>}, {pipeline_mode = #tpu.pipeline_mode<synchronous>, transform_indices = @transform_2, window_bounds = array<i64: 8, 1>}, {transform_indices = @transform_3, window_bounds = array<i64: 1, 1, 8, 288>}]} {
    %c0 = arith.constant 0 : index
    %c0_0 = arith.constant 0 : index
    %c0_1 = arith.constant 0 : index
    %c0_2 = arith.constant 0 : index
    %0 = vector.load %arg2[%c0, %c0_0, %c0_1, %c0_2] : memref<1x1x8x342xf32, #tpu.memory_space<vmem>>, vector<1x1x8x288xf32>
    %1 = vector.shape_cast %0 : vector<1x1x8x288xf32> to vector<8x288xf32>
    %c0_3 = arith.constant 0 : index
    %c0_4 = arith.constant 0 : index
    %2 = vector.load %arg6[%c0_3, %c0_4] : memref<72x288xf32, #tpu.memory_space<vmem>>, vector<8x288xf32>
    tpu.vector_store %arg6[%c0_3, %c0_4], %1 {strides = array<i32>} : memref<72x288xf32, #tpu.memory_space<vmem>>, vector<8x288xf32>,
    %c0_5 = arith.constant 0 : index
    %c0_6 = arith.constant 0 : index
    %c0_7 = arith.constant 0 : index
    %c1 = arith.constant 1 : index
    %3 = vector.load %arg2[%c0_5, %c0_6, %c0_7, %c1] : memref<1x1x8x342xf32, #tpu.memory_space<vmem>>, vector<1x1x8x288xf32>
    %4 = vector.shape_cast %3 : vector<1x1x8x288xf32> to vector<8x288xf32>
    %c8 = arith.constant 8 : index
    %c0_8 = arith.constant 0 : index
    %5 = vector.load %arg6[%c8, %c0_8] : memref<72x288xf32, #tpu.memory_space<vmem>>, vector<8x288xf32>
    tpu.vector_store %arg6[%c8, %c0_8], %4 {strides = array<i32>} : memref<72x288xf32, #tpu.memory_space<vmem>>, vector<8x288xf32>,
    %c0_9 = arith.constant 0 : index
    %c0_10 = arith.constant 0 : index
    %c0_11 = arith.constant 0 : index
    %c2 = arith.constant 2 : index
    %6 = vector.load %arg2[%c0_9, %c0_10, %c0_11, %c2] : memref<1x1x8x342xf32, #tpu.memory_space<vmem>>, vector<1x1x8x288xf32>
    %7 = vector.shape_cast %6 : vector<1x1x8x288xf32> to vector<8x288xf32>
    %c16 = arith.constant 16 : index
    %c0_12 = arith.constant 0 : index
    %8 = vector.load %arg6[%c16, %c0_12] : memref<72x288xf32, #tpu.memory_space<vmem>>, vector<8x288xf32>
    tpu.vector_store %arg6[%c16, %c0_12], %7 {strides = array<i32>} : memref<72x288xf32, #tpu.memory_space<vmem>>, vector<8x288xf32>,
    %c0_13 = arith.constant 0 : index
    %c0_14 = arith.constant 0 : index
    %c0_15 = arith.constant 0 : index
    %c18 = arith.constant 18 : index
    %9 = vector.load %arg2[%c0_13, %c0_14, %c0_15, %c18] : memref<1x1x8x342xf32, #tpu.memory_space<vmem>>, vector<1x1x8x288xf32>
    %10 = vector.shape_cast %9 : vector<1x1x8x288xf32> to vector<8x288xf32>
    %c24 = arith.constant 24 : index
    %c0_16 = arith.constant 0 : index
    %11 = vector.load %arg6[%c24, %c0_16] : memref<72x288xf32, #tpu.memory_space<vmem>>, vector<8x288xf32>
    tpu.vector_store %arg6[%c24, %c0_16], %10 {strides = array<i32>} : memref<72x288xf32, #tpu.memory_space<vmem>>, vector<8x288xf32>,
    %c0_17 = arith.constant 0 : index
    %c0_18 = arith.constant 0 : index
    %c0_19 = arith.constant 0 : index
    %c19 = arith.constant 19 : index
    %12 = vector.load %arg2[%c0_17, %c0_18, %c0_19, %c19] : memref<1x1x8x342xf32, #tpu.memory_space<vmem>>, vector<1x1x8x288xf32>
    %13 = vector.shape_cast %12 : vector<1x1x8x288xf32> to vector<8x288xf32>
    %c32 = arith.constant 32 : index
    %c0_20 = arith.constant 0 : index
    %14 = vector.load %arg6[%c32, %c0_20] : memref<72x288xf32, #tpu.memory_space<vmem>>, vector<8x288xf32>
    tpu.vector_store %arg6[%c32, %c0_20], %13 {strides = array<i32>} : memref<72x288xf32, #tpu.memory_space<vmem>>, vector<8x288xf32>,
    %c0_21 = arith.constant 0 : index
    %c0_22 = arith.constant 0 : index
    %c0_23 = arith.constant 0 : index
    %c20 = arith.constant 20 : index
    %15 = vector.load %arg2[%c0_21, %c0_22, %c0_23, %c20] : memref<1x1x8x342xf32, #tpu.memory_space<vmem>>, vector<1x1x8x288xf32>
    %16 = vector.shape_cast %15 : vector<1x1x8x288xf32> to vector<8x288xf32>
    %c40 = arith.constant 40 : index
    %c0_24 = arith.constant 0 : index
    %17 = vector.load %arg6[%c40, %c0_24] : memref<72x288xf32, #tpu.memory_space<vmem>>, vector<8x288xf32>
    tpu.vector_store %arg6[%c40, %c0_24], %16 {strides = array<i32>} : memref<72x288xf32, #tpu.memory_space<vmem>>, vector<8x288xf32>,
    %c0_25 = arith.constant 0 : index
    %c0_26 = arith.constant 0 : index
    %c0_27 = arith.constant 0 : index
    %c36 = arith.constant 36 : index
    %18 = vector.load %arg2[%c0_25, %c0_26, %c0_27, %c36] : memref<1x1x8x342xf32, #tpu.memory_space<vmem>>, vector<1x1x8x288xf32>
    %19 = vector.shape_cast %18 : vector<1x1x8x288xf32> to vector<8x288xf32>
    %c48 = arith.constant 48 : index
    %c0_28 = arith.constant 0 : index
    %20 = vector.load %arg6[%c48, %c0_28] : memref<72x288xf32, #tpu.memory_space<vmem>>, vector<8x288xf32>
    tpu.vector_store %arg6[%c48, %c0_28], %19 {strides = array<i32>} : memref<72x288xf32, #tpu.memory_space<vmem>>, vector<8x288xf32>,
    %c0_29 = arith.constant 0 : index
    %c0_30 = arith.constant 0 : index
    %c0_31 = arith.constant 0 : index
    %c37 = arith.constant 37 : index
    %21 = vector.load %arg2[%c0_29, %c0_30, %c0_31, %c37] : memref<1x1x8x342xf32, #tpu.memory_space<vmem>>, vector<1x1x8x288xf32>
    %22 = vector.shape_cast %21 : vector<1x1x8x288xf32> to vector<8x288xf32>
    %c56 = arith.constant 56 : index
    %c0_32 = arith.constant 0 : index
    %23 = vector.load %arg6[%c56, %c0_32] : memref<72x288xf32, #tpu.memory_space<vmem>>, vector<8x288xf32>
    tpu.vector_store %arg6[%c56, %c0_32], %22 {strides = array<i32>} : memref<72x288xf32, #tpu.memory_space<vmem>>, vector<8x288xf32>,
    %c0_33 = arith.constant 0 : index
    %c0_34 = arith.constant 0 : index
    %c0_35 = arith.constant 0 : index
    %c38 = arith.constant 38 : index
    %24 = vector.load %arg2[%c0_33, %c0_34, %c0_35, %c38] : memref<1x1x8x342xf32, #tpu.memory_space<vmem>>, vector<1x1x8x288xf32>
    %25 = vector.shape_cast %24 : vector<1x1x8x288xf32> to vector<8x288xf32>
    %c64 = arith.constant 64 : index
    %c0_36 = arith.constant 0 : index
    %26 = vector.load %arg6[%c64, %c0_36] : memref<72x288xf32, #tpu.memory_space<vmem>>, vector<8x288xf32>
    tpu.vector_store %arg6[%c64, %c0_36], %25 {strides = array<i32>} : memref<72x288xf32, #tpu.memory_space<vmem>>, vector<8x288xf32>,
    %c0_37 = arith.constant 0 : index
    %c0_38 = arith.constant 0 : index
    %27 = vector.load %arg3[%c0_37, %c0_38] : memref<8x72xf32, #tpu.memory_space<vmem>>, vector<8x72xf32>
    %c0_39 = arith.constant 0 : index
    %c0_40 = arith.constant 0 : index
    %28 = vector.load %arg6[%c0_39, %c0_40] : memref<72x288xf32, #tpu.memory_space<vmem>>, vector<72x288xf32>
    %cst = arith.constant dense<0.000000e+00> : vector<8x288xf32>
    %29 = tpu.matmul %27, %28, %cst {dimension_numbers = #tpu.dot_dimension_numbers<[1], [0], [0], [1], [0, 0, 1, 1], [], []>} : vector<8x72xf32>, vector<72x288xf32>, vector<8x288xf32> -> vector<8x288xf32>
    %c0_41 = arith.constant 0 : index
    %c0_42 = arith.constant 0 : index
    %30 = vector.load %arg4[%c0_41, %c0_42] : memref<8x1xf32, #tpu.memory_space<vmem>>, vector<8x1xf32>
    %31 = vector.broadcast %30 : vector<8x1xf32> to vector<8x288xf32>
    %32 = arith.addf %29, %31 : vector<8x288xf32>
    %c0_43 = arith.constant 0 : index
    %c0_44 = arith.constant 0 : index
    %c0_45 = arith.constant 0 : index
    %c0_46 = arith.constant 0 : index
    %33 = vector.load %arg5[%c0_43, %c0_44, %c0_45, %c0_46] : memref<1x1x8x288xf32, #tpu.memory_space<vmem>>, vector<1x1x8x288xf32>
    %34 = vector.shape_cast %33 : vector<1x1x8x288xf32> to vector<8x288xf32>
    %35 = vector.shape_cast %32 : vector<8x288xf32> to vector<1x1x8x288xf32>
    tpu.vector_store %arg5[%c0_43, %c0_44, %c0_45, %c0_46], %35 {strides = array<i32>} : memref<1x1x8x288xf32, #tpu.memory_space<vmem>>, vector<1x1x8x288xf32>,
    return
  }
  func.func @transform_0(%arg0: i32, %arg1: i32) -> (i32, i32, i32, i32) {
    %c0_i32 = arith.constant 0 : i32
    %c0_i32_0 = arith.constant 0 : i32
    %c0_i32_1 = arith.constant 0 : i32
    return %arg0, %arg1, %c0_i32, %c0_i32_0 : i32, i32, i32, i32
  }
  func.func @transform_1(%arg0: i32, %arg1: i32) -> (i32, i32) {
    %c0_i32 = arith.constant 0 : i32
    %c0_i32_0 = arith.constant 0 : i32
    %c0_i32_1 = arith.constant 0 : i32
    return %c0_i32, %c0_i32_0 : i32, i32
  }
  func.func @transform_2(%arg0: i32, %arg1: i32) -> (i32, i32) {
    %c0_i32 = arith.constant 0 : i32
    %c0_i32_0 = arith.constant 0 : i32
    %c0_i32_1 = arith.constant 0 : i32
    return %c0_i32, %c0_i32_0 : i32, i32
  }
  func.func @transform_3(%arg0: i32, %arg1: i32) -> (i32, i32, i32, i32) {
    %c0_i32 = arith.constant 0 : i32
    %c0_i32_0 = arith.constant 0 : i32
    %c0_i32_1 = arith.constant 0 : i32
    return %arg0, %arg1, %c0_i32, %c0_i32_0 : i32, i32, i32, i32
  }
}

</mosaic_0001>

<llo_original>
// kernel: tpu_custom_call.1
$region0: #{tpu_custom_call.1}
  #allocation0 [shape = 'u32[]', space=smem, size = 0x4, offset = 0x4, fixed_abs, tag = 'smem constant byte address 0x4 - core index']
  #allocation1 [shape = 'u32[144,128]{1,0:T(1,128)}', space=vmem, size = 0x12000, scoped, tag = 'internal scratch']
  #allocation2 [shape = 'f32[72,288]{1,0:T(8,128)}', space=vmem, size = 0x1b000, scoped, tag = 'scratch operand']
  %s0 = inlined_call_operand.hbm [shape: f32[2,1,8,342], index: 0, kind: input, shape index: {}]
  %s1 = inlined_call_operand.vmem [shape: f32[8,72], index: 1, kind: input, shape index: {}]
  %s2 = inlined_call_operand.vmem [shape: f32[8,1], index: 2, kind: input, shape index: {}]
  %s3 = inlined_call_operand.hbm [shape: f32[2,1,8,288], index: 3, kind: output, shape index: {}]
  %s4 = sld [smem:[#allocation0]]
  $region49: #{tpu_custom_call.1} parent=0
    _
  %s6 = ssub.s32 1, %s4
  %s7 = scalar_select 0, %s6, %s4
  $region1: #{tpu_custom_call.1} parent=0
    #allocation3 [shape = 'u8[24576]{0}', space=vmem, size = 0x6000, scoped, tag = 'input window, operand 0']
    #allocation4 [shape = 's32[2]{0}', space=sflag, size = 0x8, scoped, tag = 'scoped memory for tpu_custom_call.1']
    #allocation5 [shape = 's32[2]{0}', space=sflag, size = 0x8, scoped, tag = 'scoped memory for tpu_custom_call.1']
    #allocation6 [shape = 'u8[24576]{0}', space=vmem, size = 0x6000, scoped, tag = 'output window, operand 0']
    %8 = vsyncpa [#allocation4], 0
    %s9 = scalar_lea.sflag [#allocation4], 1
    %10 = vsyncpa %s9, 0
    %11 = vsyncpa [#allocation5], 0
    %s12 = scalar_lea.sflag [#allocation5], 1
    %13 = vsyncpa %s12, 0
    loop: start=0, step=1, limit=4
    $region2: #{tpu_custom_call.1} parent=1 // loop_pre_header
      _
    $region3: #{tpu_custom_call.1} parent=1 // loop_header
      %s15 = sphi 0, %s19
      %p16 = scmp.ge.s32.totalorder %s15, 4
      %s22 = sphi 0, %s34
      %s23 = sphi 0, %s30
      %s24 = sphi 0, %s22
      %s25 = sphi 0, %s23
      %s26 = sphi 0, %s24
      %s27 = sphi 0, %s25
      %s39 = sphi 0, %s41
      %s42 = sphi 0, %s39
      %s43 = sphi 0, %s42
      %s59 = sphi 0, %s43
      %s63 = sphi 0, %s63
      %s65 = sphi 0, %s63
      %s66 = sphi 0, %s65
      %s80 = sphi 0, %s66
      %s84 = sphi 0, %s84
      %s86 = sphi 0, %s84
      %s87 = sphi 0, %s86
      %s101 = sphi 0, %s87
      %s109 = sphi 0, %s111
      %s112 = sphi 0, %s109
      %s113 = sphi 0, %s112
      %s129 = sphi 0, %s113
    $region4: #{tpu_custom_call.1} parent=1 // loop_header_branch
      %18 = sbr.rel (%p16) target = $region8
    $region5: #{tpu_custom_call.1} parent=1 // loop_body
      %s20 = ssub.s32 %s15, 1
      %s21 = ssub.s32 %s15, 2
      %s28 = sadd.s32 1, %s23
      %p29 = scmp.ge.s32.totalorder %s28, 1
      %s30 = scalar_select %p29, 0, %s28
      %s31 = sadd.s32 1, %s22
      %s32 = scalar_select %p29, %s31, %s22
      %p33 = scmp.ge.s32.totalorder %s32, 2
      %s34 = scalar_select %p33, 0, %s32
      %s35 = ssub.s32 %s22, %s34
      %s36 = ssub.s32 %s23, %s30
      %s37 = sor.u32 %s35, %s36
      %p38 = scmp.eq.s32.totalorder %s37, 0
      %s40 = sadd.s32 %s39, 1
      %s41 = scalar_select %p38, %s39, %s40
      %p44 = pneg %p38
      %p45 = scmp.eq.s32.totalorder %s15, 1
      %p46 = por %p44, %p45
      %p47 = scmp.ne.s32.totalorder %s39, %s42
      %p48 = scmp.eq.s32.totalorder %s15, 0
      %p49 = por %p47, %p48
      %p50 = scmp.ne.s32.totalorder %s39, %s42
      %p51 = scmp.eq.s32.totalorder %s20, 1
      %p52 = por %p50, %p51
      %p53 = scmp.ne.s32.totalorder %s42, %s43
      %p54 = scmp.eq.s32.totalorder %s20, 0
      %p55 = por %p53, %p54
      %p56 = scmp.ne.s32.totalorder %s42, %s43
      %p57 = scmp.eq.s32.totalorder %s21, 1
      %p58 = por %p56, %p57
      %p60 = scmp.ne.s32.totalorder %s43, %s59
      %p61 = scmp.eq.s32.totalorder %s21, 0
      %p62 = por %p60, %p61
      %s64 = sadd.s32 %s63, 1
      %p67 = scmp.eq.s32.totalorder %s15, 1
      %p68 = scmp.ne.s32.totalorder %s63, %s65
      %p69 = scmp.eq.s32.totalorder %s15, 0
      %p70 = por %p68, %p69
      %p71 = scmp.ne.s32.totalorder %s63, %s65
      %p72 = scmp.eq.s32.totalorder %s20, 1
      %p73 = por %p71, %p72
      %p74 = scmp.ne.s32.totalorder %s65, %s66
      %p75 = scmp.eq.s32.totalorder %s20, 0
      %p76 = por %p74, %p75
      %p77 = scmp.ne.s32.totalorder %s65, %s66
      %p78 = scmp.eq.s32.totalorder %s21, 1
      %p79 = por %p77, %p78
      %p81 = scmp.ne.s32.totalorder %s66, %s80
      %p82 = scmp.eq.s32.totalorder %s21, 0
      %p83 = por %p81, %p82
      %s85 = sadd.s32 %s84, 1
      %p88 = scmp.eq.s32.totalorder %s15, 1
      %p89 = scmp.ne.s32.totalorder %s84, %s86
      %p90 = scmp.eq.s32.totalorder %s15, 0
      %p91 = por %p89, %p90
      %p92 = scmp.ne.s32.totalorder %s84, %s86
      %p93 = scmp.eq.s32.totalorder %s20, 1
      %p94 = por %p92, %p93
      %p95 = scmp.ne.s32.totalorder %s86, %s87
      %p96 = scmp.eq.s32.totalorder %s20, 0
      %p97 = por %p95, %p96
      %p98 = scmp.ne.s32.totalorder %s86, %s87
      %p99 = scmp.eq.s32.totalorder %s21, 1
      %p100 = por %p98, %p99
      %p102 = scmp.ne.s32.totalorder %s87, %s101
      %p103 = scmp.eq.s32.totalorder %s21, 0
      %p104 = por %p102, %p103
      %s105 = ssub.s32 %s22, %s34
      %s106 = ssub.s32 %s23, %s30
      %s107 = sor.u32 %s105, %s106
      %p108 = scmp.eq.s32.totalorder %s107, 0
      %s110 = sadd.s32 %s109, 1
      %s111 = scalar_select %p108, %s109, %s110
      %p114 = pneg %p108
      %p115 = scmp.eq.s32.totalorder %s15, 1
      %p116 = por %p114, %p115
      %p117 = scmp.ne.s32.totalorder %s109, %s112
      %p118 = scmp.eq.s32.totalorder %s15, 0
      %p119 = por %p117, %p118
      %p120 = scmp.ne.s32.totalorder %s109, %s112
      %p121 = scmp.eq.s32.totalorder %s20, 1
      %p122 = por %p120, %p121
      %p123 = scmp.ne.s32.totalorder %s112, %s113
      %p124 = scmp.eq.s32.totalorder %s20, 0
      %p125 = por %p123, %p124
      %p126 = scmp.ne.s32.totalorder %s112, %s113
      %p127 = scmp.eq.s32.totalorder %s21, 1
      %p128 = por %p126, %p127
      %p130 = scmp.ne.s32.totalorder %s113, %s129
      %p131 = scmp.eq.s32.totalorder %s21, 0
      %p132 = por %p130, %p131
      %p133 = scmp.le.s32.totalorder 1, %s15
      %p134 = scmp.lt.s32.totalorder %s15, 3
      %p135 = pnand %p133, %p134
      %p136 = pneg %p135
      // Predicated region
      $region9: #{tpu_custom_call.1} parent=5 // pred_check
        _
      $region10: #{tpu_custom_call.1} parent=5 // pred_check_branch
        %138 = sbr.rel (%p135) target = $region12
      $region11: #{tpu_custom_call.1} parent=5 // pred_region
        %s139 = ssub.s32 %s15, 1
        // Predicated region
        $region13: #{tpu_custom_call.1} parent=11 // pred_check
          %p140 = pneg %p76
        $region14: #{tpu_custom_call.1} parent=11 // pred_check_branch
          %142 = sbr.rel (%p140) target = $region16
        $region15: #{tpu_custom_call.1} parent=11 // pred_region
          _
        $region16: #{tpu_custom_call.1} parent=11 // pred_fallthru
          _
        // Predicated region
        $region17: #{tpu_custom_call.1} parent=11 // pred_check
          %p143 = pneg %p97
        $region18: #{tpu_custom_call.1} parent=11 // pred_check_branch
          %145 = sbr.rel (%p143) target = $region20
        $region19: #{tpu_custom_call.1} parent=11 // pred_region
          _
        $region20: #{tpu_custom_call.1} parent=11 // pred_fallthru
          _
      $region12: #{tpu_custom_call.1} parent=5 // pred_fallthru
        _
      %p146 = scmp.lt.s32.totalorder %s15, 2
      // Predicated region
      $region21: #{tpu_custom_call.1} parent=5 // pred_check
        %p147 = pneg %p146
      $region22: #{tpu_custom_call.1} parent=5 // pred_check_branch
        %149 = sbr.rel (%p147) target = $region24
      $region23: #{tpu_custom_call.1} parent=5 // pred_region
        // Predicated region
        $region25: #{tpu_custom_call.1} parent=23 // pred_check
          %p150 = pneg %p49
        $region26: #{tpu_custom_call.1} parent=23 // pred_check_branch
          %152 = sbr.rel (%p150) target = $region28
        $region27: #{tpu_custom_call.1} parent=23 // pred_region
          %s153 = sand.u32 %s39, 1
          %s154 = scalar_lea.sflag [#allocation4], %s153
          %s155 = sand.u32 %s39, 1
          %s156 = smul.addr %s155, 24
          %s157 = scalar_lea.vmem [#allocation3], %s156
          %s159 = ssub.s32 384, 384
          %160 = vsyncadd %s154, %s159
          %s161 = smul.addr %s23, 3
          %s162 = smul.addr %s22, 3
          %s163 = sadd.s32 %s161, %s162
          %s164 = smul.addr %s163, 128
          %s165 = scalar_lea.hbm %s0, %s164
          %s167 = sshll.u32 %s157, 4
          %s168 = int_to_ptr.vmem [resolvable:$true] %s167
          %170 = dma.hbm_to_vmem [thread:$0]  %s165, 384, %s168, %s154
        $region28: #{tpu_custom_call.1} parent=23 // pred_fallthru
          _
      $region24: #{tpu_custom_call.1} parent=5 // pred_fallthru
        _
      %p171 = scmp.le.s32.totalorder 1, %s15
      %p172 = scmp.lt.s32.totalorder %s15, 3
      %p173 = pnand %p171, %p172
      %p174 = pneg %p173
      // Predicated region
      $region29: #{tpu_custom_call.1} parent=5 // pred_check
        _
      $region30: #{tpu_custom_call.1} parent=5 // pred_check_branch
        %176 = sbr.rel (%p173) target = $region32
      $region31: #{tpu_custom_call.1} parent=5 // pred_region
        %s177 = ssub.s32 %s15, 1
        %s178 = sand.u32 %s42, 1
        %s179 = scalar_lea.sflag [#allocation4], %s178
        %s180 = sand.u32 %s42, 1
        %s181 = smul.addr %s180, 24
        %s182 = scalar_lea.vmem [#allocation3], %s181
        // Predicated region
        $region33: #{tpu_custom_call.1} parent=31 // pred_check
          %p183 = pneg %p55
        $region34: #{tpu_custom_call.1} parent=31 // pred_check_branch
          %185 = sbr.rel (%p183) target = $region36
        $region35: #{tpu_custom_call.1} parent=31 // pred_region
          %186 = dma.done %s179, 384
        $region36: #{tpu_custom_call.1} parent=31 // pred_fallthru
          _
        %s187 = sand.u32 %s42, 1
        %s188 = scalar_lea.sflag [#allocation4], %s187
        %s189 = sand.u32 %s42, 1
        %s190 = smul.addr %s189, 24
        %s191 = scalar_lea.vmem [#allocation3], %s190
        %p192 = pneg %p55
        %p193 = pneg %p52
        %p194 = pneg %p76
        %p195 = pneg %p73
        %p196 = pneg %p97
        %p197 = pneg %p94
        %p198 = pneg %p125
        %p199 = pneg %p122
        %s200 = sand.u32 %s112, 1
        %s201 = scalar_lea.sflag [#allocation5], %s200
        %s202 = sand.u32 %s112, 1
        %s203 = smul.addr %s202, 24
        %s204 = scalar_lea.vmem [#allocation6], %s203
        %v205 = vld [vmem:[%s182] sm:$0xff]
        %v206 = vld [vmem:[%s182 + $0x8] sm:$0xff]
        %v207 = vld [vmem:[%s182 + $0x10] sm:$0xff]
        %208 = vst [vmem:[#allocation2] sm:$0xff] %v205
        %209 = vst [vmem:[#allocation2 + $0x8] sm:$0xff] %v206
        %vm210 = vcmask 261120
        %211 = vst.msk [vmem:[#allocation2 + $0x10] sm:$0xff] %vm210, %v207
        %v212 = vld [vmem:[%s182] sm:$0xff]
        %v213 = vld [vmem:[%s182 + $0x8] sm:$0xff]
        %v214 = vld [vmem:[%s182 + $0x10] sm:$0xff]
        %218 = vrot.lane.b32.xlu0 %v212, 127
        %v219 = vpop.permute.xlu0 %218
        %220 = vrot.lane.b32.xlu0 %v213, 127
        %v221 = vpop.permute.xlu0 %220
        %222 = vrot.lane.b32.xlu0 %v214, 127
        %v223 = vpop.permute.xlu0 %222
        %vm224 = vcmask 1039360
        %v225 = vsel %vm224, %v219, %v221
        %v226 = vsel %vm224, %v221, %v223
        %230 = vst [vmem:[#allocation2 + $0x18] sm:$0xff] %v225
        %231 = vst [vmem:[#allocation2 + $0x20] sm:$0xff] %v226
        %232 = vst.msk [vmem:[#allocation2 + $0x28] sm:$0xff] %vm210, %v223
        %v233 = vld [vmem:[%s182] sm:$0xff]
        %v234 = vld [vmem:[%s182 + $0x8] sm:$0xff]
        %v235 = vld [vmem:[%s182 + $0x10] sm:$0xff]
        %239 = vrot.lane.b32.xlu0 %v233, 126
        %v240 = vpop.permute.xlu0 %239
        %241 = vrot.lane.b32.xlu0 %v234, 126
        %v242 = vpop.permute.xlu0 %241
        %243 = vrot.lane.b32.xlu0 %v235, 126
        %v244 = vpop.permute.xlu0 %243
        %vm245 = vcmask 1031168
        %v246 = vsel %vm245, %v240, %v242
        %v247 = vsel %vm245, %v242, %v244
        %251 = vst [vmem:[#allocation2 + $0x30] sm:$0xff] %v246
        %252 = vst [vmem:[#allocation2 + $0x38] sm:$0xff] %v247
        %253 = vst.msk [vmem:[#allocation2 + $0x40] sm:$0xff] %vm210, %v244
        %v254 = vld [vmem:[%s182] sm:$0xff]
        %v255 = vld [vmem:[%s182 + $0x8] sm:$0xff]
        %v256 = vld [vmem:[%s182 + $0x10] sm:$0xff]
        %260 = vrot.lane.b32.xlu0 %v254, 110
        %v261 = vpop.permute.xlu0 %260
        %262 = vrot.lane.b32.xlu0 %v255, 110
        %v263 = vpop.permute.xlu0 %262
        %264 = vrot.lane.b32.xlu0 %v256, 110
        %v265 = vpop.permute.xlu0 %264
        %vm266 = vcmask 900096
        %v267 = vsel %vm266, %v261, %v263
        %v268 = vsel %vm266, %v263, %v265
        %272 = vst [vmem:[#allocation2 + $0x48] sm:$0xff] %v267
        %273 = vst [vmem:[#allocation2 + $0x50] sm:$0xff] %v268
        %274 = vst.msk [vmem:[#allocation2 + $0x58] sm:$0xff] %vm210, %v265
        %v275 = vld [vmem:[%s182] sm:$0xff]
        %v276 = vld [vmem:[%s182 + $0x8] sm:$0xff]
        %v277 = vld [vmem:[%s182 + $0x10] sm:$0xff]
        %281 = vrot.lane.b32.xlu0 %v275, 109
        %v282 = vpop.permute.xlu0 %281
        %283 = vrot.lane.b32.xlu0 %v276, 109
        %v284 = vpop.permute.xlu0 %283
        %285 = vrot.lane.b32.xlu0 %v277, 109
        %v286 = vpop.permute.xlu0 %285
        %vm287 = vcmask 891904
        %v288 = vsel %vm287, %v282, %v284
        %v289 = vsel %vm287, %v284, %v286
        %293 = vst [vmem:[#allocation2 + $0x60] sm:$0xff] %v288
        %294 = vst [vmem:[#allocation2 + $0x68] sm:$0xff] %v289
        %295 = vst.msk [vmem:[#allocation2 + $0x70] sm:$0xff] %vm210, %v286
        %v296 = vld [vmem:[%s182] sm:$0xff]
        %v297 = vld [vmem:[%s182 + $0x8] sm:$0xff]
        %v298 = vld [vmem:[%s182 + $0x10] sm:$0xff]
        %302 = vrot.lane.b32.xlu0 %v296, 108
        %v303 = vpop.permute.xlu0 %302
        %304 = vrot.lane.b32.xlu0 %v297, 108
        %v305 = vpop.permute.xlu0 %304
        %306 = vrot.lane.b32.xlu0 %v298, 108
        %v307 = vpop.permute.xlu0 %306
        %vm308 = vcmask 883712
        %v309 = vsel %vm308, %v303, %v305
        %v310 = vsel %vm308, %v305, %v307
        %314 = vst [vmem:[#allocation2 + $0x78] sm:$0xff] %v309
        %315 = vst [vmem:[#allocation2 + $0x80] sm:$0xff] %v310
        %316 = vst.msk [vmem:[#allocation2 + $0x88] sm:$0xff] %vm210, %v307
        %v317 = vld [vmem:[%s182] sm:$0xff]
        %v318 = vld [vmem:[%s182 + $0x8] sm:$0xff]
        %v319 = vld [vmem:[%s182 + $0x10] sm:$0xff]
        %323 = vrot.lane.b32.xlu0 %v317, 92
        %v324 = vpop.permute.xlu0 %323
        %325 = vrot.lane.b32.xlu0 %v318, 92
        %v326 = vpop.permute.xlu0 %325
        %327 = vrot.lane.b32.xlu0 %v319, 92
        %v328 = vpop.permute.xlu0 %327
        %vm329 = vcmask 752640
        %v330 = vsel %vm329, %v324, %v326
        %v331 = vsel %vm329, %v326, %v328
        %335 = vst [vmem:[#allocation2 + $0x90] sm:$0xff] %v330
        %336 = vst [vmem:[#allocation2 + $0x98] sm:$0xff] %v331
        %337 = vst.msk [vmem:[#allocation2 + $0xa0] sm:$0xff] %vm210, %v328
        %v338 = vld [vmem:[%s182] sm:$0xff]
        %v339 = vld [vmem:[%s182 + $0x8] sm:$0xff]
        %v340 = vld [vmem:[%s182 + $0x10] sm:$0xff]
        %344 = vrot.lane.b32.xlu0 %v338, 91
        %v345 = vpop.permute.xlu0 %344
        %346 = vrot.lane.b32.xlu0 %v339, 91
        %v347 = vpop.permute.xlu0 %346
        %348 = vrot.lane.b32.xlu0 %v340, 91
        %v349 = vpop.permute.xlu0 %348
        %vm350 = vcmask 744448
        %v351 = vsel %vm350, %v345, %v347
        %v352 = vsel %vm350, %v347, %v349
        %356 = vst [vmem:[#allocation2 + $0xa8] sm:$0xff] %v351
        %357 = vst [vmem:[#allocation2 + $0xb0] sm:$0xff] %v352
        %358 = vst.msk [vmem:[#allocation2 + $0xb8] sm:$0xff] %vm210, %v349
        %v359 = vld [vmem:[%s182] sm:$0xff]
        %v360 = vld [vmem:[%s182 + $0x8] sm:$0xff]
        %v361 = vld [vmem:[%s182 + $0x10] sm:$0xff]
        %365 = vrot.lane.b32.xlu0 %v359, 90
        %v366 = vpop.permute.xlu0 %365
        %367 = vrot.lane.b32.xlu0 %v360, 90
        %v368 = vpop.permute.xlu0 %367
        %369 = vrot.lane.b32.xlu0 %v361, 90
        %v370 = vpop.permute.xlu0 %369
        %vm371 = vcmask 736256
        %v372 = vsel %vm371, %v366, %v368
        %v373 = vsel %vm371, %v368, %v370
        %377 = vst [vmem:[#allocation2 + $0xc0] sm:$0xff] %v372
        %378 = vst [vmem:[#allocation2 + $0xc8] sm:$0xff] %v373
        %379 = vst.msk [vmem:[#allocation2 + $0xd0] sm:$0xff] %vm210, %v370
        %v380 = vld [vmem:[%s1] sm:$0xff]
        %v381 = vld [vmem:[#allocation2] sm:$0xff]
        %v382 = vld [vmem:[#allocation2 + $0x8] sm:$0xff]
        %v383 = vld [vmem:[#allocation2 + $0x10] sm:$0xff]
        %v384 = vld [vmem:[#allocation2 + $0x18] sm:$0xff]
        %v385 = vld [vmem:[#allocation2 + $0x20] sm:$0xff]
        %v386 = vld [vmem:[#allocation2 + $0x28] sm:$0xff]
        %v387 = vld [vmem:[#allocation2 + $0x30] sm:$0xff]
        %v388 = vld [vmem:[#allocation2 + $0x38] sm:$0xff]
        %v389 = vld [vmem:[#allocation2 + $0x40] sm:$0xff]
        %v390 = vld [vmem:[#allocation2 + $0x48] sm:$0xff]
        %v391 = vld [vmem:[#allocation2 + $0x50] sm:$0xff]
        %v392 = vld [vmem:[#allocation2 + $0x58] sm:$0xff]
        %v393 = vld [vmem:[#allocation2 + $0x60] sm:$0xff]
        %v394 = vld [vmem:[#allocation2 + $0x68] sm:$0xff]
        %v395 = vld [vmem:[#allocation2 + $0x70] sm:$0xff]
        %v396 = vld [vmem:[#allocation2 + $0x78] sm:$0xff]
        %v397 = vld [vmem:[#allocation2 + $0x80] sm:$0xff]
        %v398 = vld [vmem:[#allocation2 + $0x88] sm:$0xff]
        %v399 = vld [vmem:[#allocation2 + $0x90] sm:$0xff]
        %v400 = vld [vmem:[#allocation2 + $0x98] sm:$0xff]
        %v401 = vld [vmem:[#allocation2 + $0xa0] sm:$0xff]
        %v402 = vld [vmem:[#allocation2 + $0xa8] sm:$0xff]
        %v403 = vld [vmem:[#allocation2 + $0xb0] sm:$0xff]
        %v404 = vld [vmem:[#allocation2 + $0xb8] sm:$0xff]
        %v405 = vld [vmem:[#allocation2 + $0xc0] sm:$0xff]
        %v406 = vld [vmem:[#allocation2 + $0xc8] sm:$0xff]
        %v407 = vld [vmem:[#allocation2 + $0xd0] sm:$0xff]
        %v408 = vld [vmem:[%s2] sm:$0xff]
        %410 = vset.pattern.permute.xlu0 0
        %411 = vperm.xlu0 %410, %v408
        %v412 = vpop.permute.xlu0 %411
        %vm414 = vcmask 588800
        %v416 = vsel %vm414, %v380, 0
        %418 = vmatprep.subr.mxu0 %v382
        %419 = vmatpush1.msra.mxu0 %v381
        %420 = vmatprep.subr.mxu0 %v385
        %421 = vmatpush1.msra.mxu0 %v384
        %422 = vmatprep.subr.mxu0 %v388
        %423 = vmatpush1.msra.mxu0 %v387
        %424 = vmatprep.subr.mxu0 %v391
        %425 = vmatpush1.msra.mxu0 %v390
        %426 = vmatprep.subr.mxu0 %v394
        %427 = vmatpush1.msra.mxu0 %v393
        %428 = vmatprep.subr.mxu0 %v397
        %429 = vmatpush1.msra.mxu0 %v396
        %430 = vmatprep.subr.mxu0 %v400
        %431 = vmatpush1.msra.mxu0 %v399
        %432 = vmatprep.subr.mxu0 %v403
        %433 = vmatpush1.msra.mxu0 %v402
        %434 = vmatprep.subr.mxu0 %v406
        %435 = vmatpush1.msra.mxu0 %v405
        %436 = vmatprep.subr.mxu0 0.0
        %437 = vmatpush1.msra.mxu0 0.0
        %438 = vmatprep.subr.mxu0 0.0
        %439 = vmatpush1.msra.mxu0 0.0
        %440 = vmatprep.subr.mxu0 0.0
        %441 = vmatpush1.msra.mxu0 0.0
        %442 = vmatprep.subr.mxu0 0.0
        %443 = vmatpush1.msra.mxu0 0.0
        %444 = vmatprep.subr.mxu0 0.0
        %445 = vmatpush1.msra.mxu0 0.0
        %446 = vmatprep.subr.mxu0 0.0
        %447 = vmatpush1.msra.mxu0 0.0
        %448 = vmatprep.subr.mxu0 0.0
        %449 = vmatpush1.msra.mxu0 0.0
        %450 = vmatprep.subr.mxu0 0.0
        %451 = vmatpush1.msra.mxu0 0.0
        %452 = vmatprep.subr.mxu0 0.0
        %453 = vmatpush1.msra.mxu0 0.0
        %454 = vmatprep.subr.mxu0 0.0
        %455 = vmatpush1.msra.mxu0 0.0
        %456 = vmatprep.subr.mxu0 0.0
        %457 = vmatpush1.msra.mxu0 0.0
        %458 = vmatprep.subr.mxu0 0.0
        %459 = vmatpush1.msra.mxu0 0.0
        %460 = vmatprep.subr.mxu0 0.0
        %461 = vmatpush1.msra.mxu0 0.0
        %462 = vmatprep.subr.mxu0 0.0
        %463 = vmatpush1.msra.mxu0 0.0
        %464 = vmatprep.subr.mxu0 0.0
        %465 = vmatpush1.msra.mxu0 0.0
        %466 = vmatprep.subr.mxu0 0.0
        %467 = vmatpush1.msra.mxu0 0.0
        %468 = vmatprep.subr.mxu0 0.0
        %469 = vmatpush1.msra.mxu0 0.0
        %470 = vmatprep.subr.mxu0 0.0
        %471 = vmatpush1.msra.mxu0 0.0
        %472 = vmatprep.subr.mxu0 0.0
        %473 = vmatpush1.msra.mxu0 0.0
        %474 = vmatprep.subr.mxu0 0.0
        %475 = vmatpush1.msra.mxu0 0.0
        %476 = vmatprep.subr.mxu0 0.0
        %477 = vmatpush1.msra.mxu0 0.0
        %478 = vmatprep.subr.mxu0 0.0
        %479 = vmatpush1.msra.mxu0 0.0
        %480 = vmatprep.subr.mxu0 0.0
        %481 = vmatpush1.msra.mxu0 0.0
        %482 = vmatprep.mubr.f32.mxu0 0.0
        %483 = vmatmul.mubr.f32.gmra.mrb[0].mxu0 %v416
        %v484 = vpop.f32.mrb[0].mxu0
        %v485 = vadd.f32 %v412, %v484
        %v486 = vpop.f32.mrb[0].mxu0
        %v487 = vadd.f32 %v412, %v486
        %488 = vdwg.mxu0
        %489 = vmatprep.subr.mxu0 0.0
        %490 = vmatpush1.msra.mxu0 %v383
        %491 = vmatprep.subr.mxu0 0.0
        %492 = vmatpush1.msra.mxu0 %v386
        %493 = vmatprep.subr.mxu0 0.0
        %494 = vmatpush1.msra.mxu0 %v389
        %495 = vmatprep.subr.mxu0 0.0
        %496 = vmatpush1.msra.mxu0 %v392
        %497 = vmatprep.subr.mxu0 0.0
        %498 = vmatpush1.msra.mxu0 %v395
        %499 = vmatprep.subr.mxu0 0.0
        %500 = vmatpush1.msra.mxu0 %v398
        %501 = vmatprep.subr.mxu0 0.0
        %502 = vmatpush1.msra.mxu0 %v401
        %503 = vmatprep.subr.mxu0 0.0
        %504 = vmatpush1.msra.mxu0 %v404
        %505 = vmatprep.subr.mxu0 0.0
        %506 = vmatpush1.msra.mxu0 %v407
        %507 = vmatprep.subr.mxu0 0.0
        %508 = vmatpush1.msra.mxu0 0.0
        %509 = vmatprep.subr.mxu0 0.0
        %510 = vmatpush1.msra.mxu0 0.0
        %511 = vmatprep.subr.mxu0 0.0
        %512 = vmatpush1.msra.mxu0 0.0
        %513 = vmatprep.subr.mxu0 0.0
        %514 = vmatpush1.msra.mxu0 0.0
        %515 = vmatprep.subr.mxu0 0.0
        %516 = vmatpush1.msra.mxu0 0.0
        %517 = vmatprep.subr.mxu0 0.0
        %518 = vmatpush1.msra.mxu0 0.0
        %519 = vmatprep.subr.mxu0 0.0
        %520 = vmatpush1.msra.mxu0 0.0
        %521 = vmatprep.subr.mxu0 0.0
        %522 = vmatpush1.msra.mxu0 0.0
        %523 = vmatprep.subr.mxu0 0.0
        %524 = vmatpush1.msra.mxu0 0.0
        %525 = vmatprep.subr.mxu0 0.0
        %526 = vmatpush1.msra.mxu0 0.0
        %527 = vmatprep.subr.mxu0 0.0
        %528 = vmatpush1.msra.mxu0 0.0
        %529 = vmatprep.subr.mxu0 0.0
        %530 = vmatpush1.msra.mxu0 0.0
        %531 = vmatprep.subr.mxu0 0.0
        %532 = vmatpush1.msra.mxu0 0.0
        %533 = vmatprep.subr.mxu0 0.0
        %534 = vmatpush1.msra.mxu0 0.0
        %535 = vmatprep.subr.mxu0 0.0
        %536 = vmatpush1.msra.mxu0 0.0
        %537 = vmatprep.subr.mxu0 0.0
        %538 = vmatpush1.msra.mxu0 0.0
        %539 = vmatprep.subr.mxu0 0.0
        %540 = vmatpush1.msra.mxu0 0.0
        %541 = vmatprep.subr.mxu0 0.0
        %542 = vmatpush1.msra.mxu0 0.0
        %543 = vmatprep.subr.mxu0 0.0
        %544 = vmatpush1.msra.mxu0 0.0
        %545 = vmatprep.subr.mxu0 0.0
        %546 = vmatpush1.msra.mxu0 0.0
        %547 = vmatprep.subr.mxu0 0.0
        %548 = vmatpush1.msra.mxu0 0.0
        %549 = vmatprep.subr.mxu0 0.0
        %550 = vmatpush1.msra.mxu0 0.0
        %551 = vmatprep.subr.mxu0 0.0
        %552 = vmatpush1.msra.mxu0 0.0
        %553 = vmatprep.mubr.f32.mxu0 0.0
        %554 = vmatmul.mubr.f32.gmra.mrb[0].mxu0 %v416
        %v555 = vpop.f32.mrb[0].mxu0
        %v556 = vadd.f32 %v412, %v555
        %v557 = vpop.f32.mrb[0].mxu0
        %558 = vdwg.mxu0
        %559 = vst [vmem:[%s204] sm:$0xff] %v485
        %560 = vst [vmem:[%s204 + $0x8] sm:$0xff] %v487
        %561 = vst.msk [vmem:[%s204 + $0x10] sm:$0xff] %vm210, %v556
        %s562 = sand.u32 %s112, 1
        %s563 = scalar_lea.sflag [#allocation5], %s562
        %s564 = sand.u32 %s112, 1
        %s565 = smul.addr %s564, 24
        %s566 = scalar_lea.vmem [#allocation6], %s565
        // Predicated region
        $region37: #{tpu_custom_call.1} parent=31 // pred_check
          %p567 = pneg %p122
        $region38: #{tpu_custom_call.1} parent=31 // pred_check_branch
          %569 = sbr.rel (%p567) target = $region40
        $region39: #{tpu_custom_call.1} parent=31 // pred_region
          %s571 = ssub.s32 384, 384
          %572 = vsyncadd %s563, %s571
          %s573 = smul.addr %s25, 3
          %s574 = smul.addr %s24, 3
          %s575 = sadd.s32 %s573, %s574
          %s576 = smul.addr %s575, 128
          %s577 = scalar_lea.hbm %s3, %s576
          %s579 = sshll.u32 %s566, 4
          %s580 = int_to_ptr.vmem [resolvable:$true] %s579
          %582 = dma.vmem_to_hbm [thread:$0]  %s580, 384, %s577, %s563
        $region40: #{tpu_custom_call.1} parent=31 // pred_fallthru
          _
      $region32: #{tpu_custom_call.1} parent=5 // pred_fallthru
        _
      %p583 = scmp.le.s32.totalorder 2, %s15
      // Predicated region
      $region41: #{tpu_custom_call.1} parent=5 // pred_check
        %p584 = pneg %p583
      $region42: #{tpu_custom_call.1} parent=5 // pred_check_branch
        %586 = sbr.rel (%p584) target = $region44
      $region43: #{tpu_custom_call.1} parent=5 // pred_region
        %s587 = ssub.s32 %s15, 2
        // Predicated region
        $region45: #{tpu_custom_call.1} parent=43 // pred_check
          %p588 = pneg %p128
        $region46: #{tpu_custom_call.1} parent=43 // pred_check_branch
          %590 = sbr.rel (%p588) target = $region48
        $region47: #{tpu_custom_call.1} parent=43 // pred_region
          %s591 = sand.u32 %s113, 1
          %s592 = scalar_lea.sflag [#allocation5], %s591
          %s593 = sand.u32 %s113, 1
          %s594 = smul.addr %s593, 24
          %s595 = scalar_lea.vmem [#allocation6], %s594
          %596 = dma.done %s592, 384
        $region48: #{tpu_custom_call.1} parent=43 // pred_fallthru
          _
      $region44: #{tpu_custom_call.1} parent=5 // pred_fallthru
        _
    $region6: #{tpu_custom_call.1} parent=1 // loop_footer
      %s19 = sadd.s32 1, %s15
    $region7: #{tpu_custom_call.1} parent=1 // loop_footer_branch
      %14 = sbr.rel target = $region3
    $region8: #{tpu_custom_call.1} parent=1 // loop_exit
      _
    %597 = vsyncpa [#allocation4], 1
    %s598 = scalar_lea.sflag [#allocation4], 1
    %599 = vsyncpa %s598, 1
    %600 = vsyncpa [#allocation5], 1
    %s601 = scalar_lea.sflag [#allocation5], 1
    %602 = vsyncpa %s601, 1

</llo_original>
